<compile_context>
chip_gen: v7x
topology: tpu7x:2x2x1
jax: 0.10.0
libtpu: 0.0.40
codegen_flags: <defaults>
</compile_context>

<pallas_src>
import functools

import jax
import jax.numpy as jnp
import numpy as np
from jax import lax
from jax.experimental import pallas as pl
from jax.experimental.pallas import tpu as pltpu


def _leaky_relu(v, slope=0.1):
    return jnp.where(v > 0, v, slope * v)


def _vmem_limit_bytes():
    """Per-generation scoped-VMEM limit (v5e/v6e: 128 MiB physical, v7x: 64 MiB)."""
    default = 48 * 1024 * 1024
    try:
        phys = int(pltpu.get_tpu_info().vmem_capacity_bytes)
    except Exception:  # interpret mode / non-TPU backend / older jax
        return default
    if phys >= 100 * 1024 * 1024:
        return 100 * 1024 * 1024
    return max(min(phys - 16 * 1024 * 1024, default), 32 * 1024 * 1024)


def _pick_row_tile(H, W, C, Cmid, vmem_limit_bytes, max_rows=None):
    """Largest row tile TH (TH | H, TH*W % 128 == 0 or TH == H) that fits VMEM."""
    weight_bytes = (3 * C * 3 * Cmid + Cmid * C) * 2 + (C + Cmid) * 4
    budget = int(0.6 * vmem_limit_bytes) - 4 * weight_bytes
    per_row = 33 * C * W                 # rough bytes/row: pipelined io + intermediates
    cap = max(budget // per_row, 1)
    if max_rows is not None:
        cap = min(cap, max_rows)
    divisors = [d for d in range(1, H + 1) if H % d == 0]
    candidates = [d for d in divisors if (d * W) % 128 == 0]
    if H not in candidates:
        candidates.append(H)             # full-extent block is always legal
    fitting = [d for d in candidates if d <= cap]
    return max(fitting) if fitting else min(candidates)


def _residual_kernel(masks_ref, x_ref, halo_ref, w1_ref, b1_ref, w2_ref, b2_ref,
                     o_ref, *, W, TH):
    """One (image, row-tile) per grid step.  Lane-dense layout: channels x (TH*W).

    masks_ref : (2, TH*W) bf16   row 0: "x-1 in range", row 1: "x+1 in range"
    x_ref     : (1, C, TH*W) f32          the tile's rows of the input image
    halo_ref  : (1, 1, C, 2*W+2) f32      [corner, row above, row below, corner]
    w1_ref    : (Cmid, C) bf16            1x1 conv weight with BN1 scale folded in
    b1_ref    : (Cmid, 1) f32             folded BN1 bias
    w2_ref    : (3, C, 3*Cmid) bf16       [ky, cout, kx*Cmid+cin], BN2 scale folded in
    b2_ref    : (C, 1) f32                folded BN2 bias
    o_ref     : (1, C, TH*W) f32
    """
    THW = TH * W

    x = x_ref[0]                                   # (C, THW) f32
    halo = halo_ref[0, 0]                          # (C, 2W+2) f32
    mask_l = masks_ref[0:1, :]                     # (1, THW) bf16
    mask_r = masks_ref[1:2, :]

    w1 = w1_ref[...]                               # (Cmid, C) bf16
    b1 = b1_ref[...]                               # (Cmid, 1) f32

    # ---- ConvBlock1 (1x1 conv, BN scale folded) on the tile rows + halo rows.
    #      MXU matmuls: bf16 inputs, f32 accumulation.
    h_main = jnp.dot(w1, x.astype(jnp.bfloat16), preferred_element_type=jnp.float32)
    h_main = _leaky_relu(h_main + b1).astype(jnp.bfloat16)         # (Cmid, THW)

    h_halo = jnp.dot(w1, halo.astype(jnp.bfloat16), preferred_element_type=jnp.float32)
    h_halo = _leaky_relu(h_halo + b1).astype(jnp.bfloat16)         # (Cmid, 2W+2)

    # The 3x3 conv zero-pads h (not x) at the image boundary: zero the halo h
    # rows on the first / last row tile.
    t = pl.program_id(1)
    n_t = pl.num_programs(1)
    top_keep = (t > 0).astype(jnp.bfloat16)
    bot_keep = (t < n_t - 1).astype(jnp.bfloat16)
    h_top = h_halo[:, : W + 1] * top_keep          # [corner, row above]  (Cmid, W+1)
    h_bot = h_halo[:, W + 1:] * bot_keep           # [row below, corner]  (Cmid, W+1)

    # Extended tile on the flattened lane axis (all bf16, no f32 copies):
    #   [corner, row -1, rows 0..TH-1, row TH, corner]  -> width (TH+2)*W + 2.
    # The two corner lanes are only ever read by x-masked taps (don't-care values).
    hext = jnp.concatenate([h_top, h_main, h_bot], axis=1)

    def tap(ky, kx):
        v = hext[:, ky * W + kx: ky * W + kx + THW]                # (Cmid, THW) bf16
        if kx == 0:
            v = v * mask_l
        elif kx == 2:
            v = v * mask_r
        return v

    # ---- ConvBlock2: 3x3 conv as 3 MXU matmuls with K = 3*Cmid; acc initialized
    #      by the ky=0 matmul (no zero-fill + extra add).
    def band(ky):
        patches = jnp.concatenate([tap(ky, 0), tap(ky, 1), tap(ky, 2)], axis=0)
        return jnp.dot(w2_ref[ky], patches, preferred_element_type=jnp.float32)

    acc = band(0)
    acc = acc + band(1)
    acc = acc + band(2)

    # ---- folded BN2 bias + LeakyReLU + residual; lane-dense f32 store.
    o_ref[0] = (_leaky_relu(acc + b2_ref[...]) + x).astype(o_ref.dtype)


def residual_layer_pallas(x_nchw, params, *, max_rows_per_tile=None):
    """x_nchw: (N, C, H, W) float32.  Returns (N, C, H, W) float32."""
    w1, s1, b1, w2, s2, b2 = params        # PyTorch-layout weights + folded BN
    N, C, H, W = x_nchw.shape
    Cmid = w1.shape[0]

    vmem_limit = _vmem_limit_bytes()
    TH = _pick_row_tile(H, W, C, Cmid, vmem_limit, max_rows_per_tile)
    T = H // TH
    THW = TH * W

    # ---- fold BN scales into the conv weights (bias adds stay in the kernel).
    w1_k = (w1 * s1[:, None]).astype(jnp.bfloat16)                       # (Cmid, C)
    w2_s = w2 * s2[:, None, None, None]                                  # (C, Cmid, 3, 3)
    # (Cout, Cin, ky, kx) -> (ky, Cout, kx, Cin) -> (3, C, 3*Cmid)
    w2_k = jnp.transpose(w2_s, (2, 0, 3, 1)).reshape(3, C, 3 * Cmid).astype(jnp.bfloat16)
    b1_k = b1.reshape(Cmid, 1).astype(jnp.float32)
    b2_k = b2.reshape(C, 1).astype(jnp.float32)

    # ---- lane-dense input (pure reshape, no transpose) + per-tile halo rows.
    x2 = x_nchw.reshape(N, C, H * W)
    x_pad = jnp.pad(x_nchw, ((0, 0), (0, 0), (1, 1), (0, 0)))            # (N, C, H+2, W)
    top = jnp.transpose(x_pad[:, :, 0: T * TH: TH, :], (0, 2, 1, 3))          # (N, T, C, W)
    bot = jnp.transpose(x_pad[:, :, TH + 1: H + 2: TH, :], (0, 2, 1, 3))      # (N, T, C, W)
    zcol = jnp.zeros((N, T, C, 1), x_nchw.dtype)
    halo = jnp.concatenate([zcol, top, bot, zcol], axis=-1)              # (N, T, C, 2W+2)

    # x-boundary masks for the dx = -1 / +1 taps (depend only on lane % W).
    xcol = np.arange(THW) % W
    masks = jnp.asarray(np.stack([(xcol >= 1), (xcol <= W - 2)]).astype(np.float32),
                        dtype=jnp.bfloat16)                              # (2, THW)

    kernel = functools.partial(_residual_kernel, W=W, TH=TH)

    out = pl.pallas_call(
        kernel,
        out_shape=jax.ShapeDtypeStruct((N, C, H * W), jnp.float32),
        grid=(N, T),
        in_specs=[
            pl.BlockSpec((2, THW), lambda n, t: (0, 0)),
            pl.BlockSpec((1, C, THW), lambda n, t: (n, 0, t)),
            pl.BlockSpec((1, 1, C, 2 * W + 2), lambda n, t: (n, t, 0, 0)),
            pl.BlockSpec((Cmid, C), lambda n, t: (0, 0)),
            pl.BlockSpec((Cmid, 1), lambda n, t: (0, 0)),
            pl.BlockSpec((3, C, 3 * Cmid), lambda n, t: (0, 0, 0)),
            pl.BlockSpec((C, 1), lambda n, t: (0, 0)),
        ],
        out_specs=pl.BlockSpec((1, C, THW), lambda n, t: (n, 0, t)),
        compiler_params=pltpu.CompilerParams(
            dimension_semantics=("parallel", "parallel"),
            vmem_limit_bytes=vmem_limit,
        ),
    )(masks, x2, halo, w1_k, b1_k, w2_k, b2_k)

    return out.reshape(N, C, H, W)


def make_params(key, in_channels):
    """Deterministic synthetic parameters (PyTorch-layout conv weights + folded BN)."""
    C = in_channels
    Cmid = C // 2
    eps = 1e-5
    k1, k2, k3, k4 = jax.random.split(key, 4)

    w1 = jax.random.normal(k1, (Cmid, C), jnp.float32) * 0.2        # 1x1: (Cout, Cin)
    w2 = jax.random.normal(k2, (C, Cmid, 3, 3), jnp.float32) * 0.2  # 3x3: OIHW

    gamma1 = 1.0 + 0.1 * jax.random.normal(k3, (Cmid,), jnp.float32)
    beta1 = 0.05 * jnp.arange(Cmid, dtype=jnp.float32)
    mean1 = 0.01 * jnp.arange(Cmid, dtype=jnp.float32)
    var1 = 1.0 + 0.1 * jnp.arange(Cmid, dtype=jnp.float32)
    s1 = gamma1 / jnp.sqrt(var1 + eps)
    b1 = beta1 - mean1 * s1

    gamma2 = 1.0 + 0.1 * jax.random.normal(k4, (C,), jnp.float32)
    beta2 = -0.03 * jnp.arange(C, dtype=jnp.float32)
    mean2 = 0.02 * jnp.arange(C, dtype=jnp.float32)
    var2 = 1.0 + 0.05 * jnp.arange(C, dtype=jnp.float32)
    s2 = gamma2 / jnp.sqrt(var2 + eps)
    b2 = beta2 - mean2 * s2

    return (w1, s1, b1, w2, s2, b2)


def residual_layer_ref(x_nchw, params):
    """Pure-JAX reference (lax.conv) for correctness checking."""
    w1, s1, b1, w2, s2, b2 = params
    w1_oihw = w1[:, :, None, None]                         # (Cmid, C, 1, 1)
    h = lax.conv_general_dilated(x_nchw, w1_oihw, (1, 1), "VALID",
                                 dimension_numbers=("NCHW", "OIHW", "NCHW"))
    h = h * s1.reshape(1, -1, 1, 1) + b1.reshape(1, -1, 1, 1)
    h = jnp.where(h > 0, h, 0.1 * h)
    y = lax.conv_general_dilated(h, w2, (1, 1), ((1, 1), (1, 1)),
                                 dimension_numbers=("NCHW", "OIHW", "NCHW"))
    y = y * s2.reshape(1, -1, 1, 1) + b2.reshape(1, -1, 1, 1)
    y = jnp.where(y > 0, y, 0.1 * y)
    return x_nchw + y


if __name__ == "__main__":
    N, C, H, W = 2, 16, 16, 16            # Cmid = 8 keeps sublane tiles aligned
    key = jax.random.PRNGKey(0)
    kx_, kp = jax.random.split(key)

    x = jax.random.normal(kx_, (N, C, H, W), jnp.float32)
    params = make_params(kp, C)

    ref = jax.block_until_ready(residual_layer_ref(x, params))

    # Default tile selection (single row tile for this small feature map).
    out0 = jax.block_until_ready(residual_layer_pallas(x, params))
    np.testing.assert_allclose(np.asarray(out0), np.asarray(ref), rtol=5e-2, atol=5e-2)

    # Force the row-tiled path (2 tiles of 8 rows) to exercise the halo logic.
    out1 = jax.block_until_ready(residual_layer_pallas(x, params, max_rows_per_tile=8))
    np.testing.assert_allclose(np.asarray(out1), np.asarray(ref), rtol=5e-2, atol=5e-2)

    print("KERNEL_OK")
</pallas_src>

<mosaic_0001>
module attributes {stable_mosaic.version = 11 : i64} {
  func.func @_residual_kernel(%arg0: i32, %arg1: i32, %arg2: memref<2x256xbf16, #tpu.memory_space<vmem>>, %arg3: memref<1x16x256xf32, #tpu.memory_space<vmem>>, %arg4: memref<1x1x16x34xf32, #tpu.memory_space<vmem>>, %arg5: memref<8x16xbf16, #tpu.memory_space<vmem>>, %arg6: memref<8x1xf32, #tpu.memory_space<vmem>>, %arg7: memref<3x16x24xbf16, #tpu.memory_space<vmem>>, %arg8: memref<16x1xf32, #tpu.memory_space<vmem>>, %arg9: memref<1x16x256xf32, #tpu.memory_space<vmem>>) attributes {dimension_semantics = [#tpu.dimension_semantics<parallel>, #tpu.dimension_semantics<parallel>], iteration_bounds = array<i64: 2, 1>, scalar_prefetch = 0 : i64, scratch_operands = 0 : i64, tpu.core_type = #tpu.core_type<tc>, window_params = [{pipeline_mode = #tpu.pipeline_mode<synchronous>, transform_indices = @transform_0, window_bounds = array<i64: 2, 256>}, {transform_indices = @transform_1, window_bounds = array<i64: 1, 16, 256>}, {transform_indices = @transform_2, window_bounds = array<i64: 1, 1, 16, 34>}, {pipeline_mode = #tpu.pipeline_mode<synchronous>, transform_indices = @transform_3, window_bounds = array<i64: 8, 16>}, {pipeline_mode = #tpu.pipeline_mode<synchronous>, transform_indices = @transform_4, window_bounds = array<i64: 8, 1>}, {pipeline_mode = #tpu.pipeline_mode<synchronous>, transform_indices = @transform_5, window_bounds = array<i64: 3, 16, 24>}, {pipeline_mode = #tpu.pipeline_mode<synchronous>, transform_indices = @transform_6, window_bounds = array<i64: 16, 1>}, {transform_indices = @transform_7, window_bounds = array<i64: 1, 16, 256>}]} {
    %c0 = arith.constant 0 : index
    %c0_0 = arith.constant 0 : index
    %c0_1 = arith.constant 0 : index
    %0 = vector.load %arg3[%c0, %c0_0, %c0_1] : memref<1x16x256xf32, #tpu.memory_space<vmem>>, vector<1x16x256xf32>
    %1 = vector.shape_cast %0 : vector<1x16x256xf32> to vector<16x256xf32>
    %c0_2 = arith.constant 0 : index
    %c0_3 = arith.constant 0 : index
    %c0_4 = arith.constant 0 : index
    %c0_5 = arith.constant 0 : index
    %2 = vector.load %arg4[%c0_2, %c0_3, %c0_4, %c0_5] : memref<1x1x16x34xf32, #tpu.memory_space<vmem>>, vector<1x1x16x34xf32>
    %3 = vector.shape_cast %2 : vector<1x1x16x34xf32> to vector<16x34xf32>
    %c0_6 = arith.constant 0 : index
    %c0_7 = arith.constant 0 : index
    %4 = vector.load %arg2[%c0_6, %c0_7] : memref<2x256xbf16, #tpu.memory_space<vmem>>, vector<1x256xbf16>
    %c1 = arith.constant 1 : index
    %c0_8 = arith.constant 0 : index
    %5 = vector.load %arg2[%c1, %c0_8] : memref<2x256xbf16, #tpu.memory_space<vmem>>, vector<1x256xbf16>
    %c0_9 = arith.constant 0 : index
    %c0_10 = arith.constant 0 : index
    %6 = vector.load %arg5[%c0_9, %c0_10] : memref<8x16xbf16, #tpu.memory_space<vmem>>, vector<8x16xbf16>
    %c0_11 = arith.constant 0 : index
    %c0_12 = arith.constant 0 : index
    %7 = vector.load %arg6[%c0_11, %c0_12] : memref<8x1xf32, #tpu.memory_space<vmem>>, vector<8x1xf32>
    %8 = arith.truncf %1 : vector<16x256xf32> to vector<16x256xbf16>
    %cst = arith.constant dense<0.000000e+00> : vector<8x256xf32>
    %9 = tpu.matmul %6, %8, %cst {dimension_numbers = #tpu.dot_dimension_numbers<[1], [0], [0], [1], [0, 0, 1, 1], [], []>} : vector<8x16xbf16>, vector<16x256xbf16>, vector<8x256xf32> -> vector<8x256xf32>
    %10 = vector.broadcast %7 : vector<8x1xf32> to vector<8x256xf32>
    %11 = arith.addf %9, %10 : vector<8x256xf32>
    %cst_13 = arith.constant 0.000000e+00 : f32
    %12 = vector.broadcast %cst_13 : f32 to vector<8x256xf32>
    %13 = arith.cmpf ogt, %11, %12 : vector<8x256xf32>
    %cst_14 = arith.constant 1.000000e-01 : f32
    %14 = vector.broadcast %cst_14 : f32 to vector<8x256xf32>
    %15 = arith.mulf %14, %11 : vector<8x256xf32>
    %16 = arith.select %13, %11, %15 : vector<8x256xi1>, vector<8x256xf32>
    %17 = arith.truncf %16 : vector<8x256xf32> to vector<8x256xbf16>
    %18 = arith.truncf %3 : vector<16x34xf32> to vector<16x34xbf16>
    %cst_15 = arith.constant dense<0.000000e+00> : vector<8x34xf32>
    %19 = tpu.matmul %6, %18, %cst_15 {dimension_numbers = #tpu.dot_dimension_numbers<[1], [0], [0], [1], [0, 0, 1, 1], [], []>} : vector<8x16xbf16>, vector<16x34xbf16>, vector<8x34xf32> -> vector<8x34xf32>
    %20 = vector.broadcast %7 : vector<8x1xf32> to vector<8x34xf32>
    %21 = arith.addf %19, %20 : vector<8x34xf32>
    %cst_16 = arith.constant 0.000000e+00 : f32
    %22 = vector.broadcast %cst_16 : f32 to vector<8x34xf32>
    %23 = arith.cmpf ogt, %21, %22 : vector<8x34xf32>
    %cst_17 = arith.constant 1.000000e-01 : f32
    %24 = vector.broadcast %cst_17 : f32 to vector<8x34xf32>
    %25 = arith.mulf %24, %21 : vector<8x34xf32>
    %26 = arith.select %23, %21, %25 : vector<8x34xi1>, vector<8x34xf32>
    %27 = arith.truncf %26 : vector<8x34xf32> to vector<8x34xbf16>
    %c0_i32 = arith.constant 0 : i32
    %28 = arith.cmpi sgt, %arg1, %c0_i32 : i32
    %29 = arith.extui %28 : i1 to i32
    %30 = arith.sitofp %29 : i32 to f32
    %31 = arith.truncf %30 : f32 to bf16
    %c0_i32_18 = arith.constant 0 : i32
    %32 = arith.cmpi slt, %arg1, %c0_i32_18 : i32
    %33 = arith.extui %32 : i1 to i32
    %34 = arith.sitofp %33 : i32 to f32
    %35 = arith.truncf %34 : f32 to bf16
    %36 = vector.extract_strided_slice %27 {offsets = [0, 0], sizes = [8, 17], strides = [1, 1]} : vector<8x34xbf16> to vector<8x17xbf16>
    %37 = vector.broadcast %31 : bf16 to vector<8x17xbf16>
    %38 = arith.mulf %36, %37 : vector<8x17xbf16>
    %39 = vector.extract_strided_slice %27 {offsets = [0, 17], sizes = [8, 17], strides = [1, 1]} : vector<8x34xbf16> to vector<8x17xbf16>
    %40 = vector.broadcast %35 : bf16 to vector<8x17xbf16>
    %41 = arith.mulf %39, %40 : vector<8x17xbf16>
    %42 = tpu.concatenate %38, %17, %41 in 1 : vector<8x17xbf16>, vector<8x256xbf16>, vector<8x17xbf16> -> vector<8x290xbf16>
    %43 = vector.extract_strided_slice %42 {offsets = [0, 0], sizes = [8, 256], strides = [1, 1]} : vector<8x290xbf16> to vector<8x256xbf16>
    %44 = vector.broadcast %4 : vector<1x256xbf16> to vector<8x256xbf16>
    %45 = arith.mulf %43, %44 : vector<8x256xbf16>
    %46 = vector.extract_strided_slice %42 {offsets = [0, 1], sizes = [8, 256], strides = [1, 1]} : vector<8x290xbf16> to vector<8x256xbf16>
    %47 = vector.extract_strided_slice %42 {offsets = [0, 2], sizes = [8, 256], strides = [1, 1]} : vector<8x290xbf16> to vector<8x256xbf16>
    %48 = vector.broadcast %5 : vector<1x256xbf16> to vector<8x256xbf16>
    %49 = arith.mulf %47, %48 : vector<8x256xbf16>
    %50 = tpu.concatenate %45, %46, %49 in 0 : vector<8x256xbf16>, vector<8x256xbf16>, vector<8x256xbf16> -> vector<24x256xbf16>
    %c0_19 = arith.constant 0 : index
    %c0_20 = arith.constant 0 : index
    %c0_21 = arith.constant 0 : index
    %51 = vector.load %arg7[%c0_19, %c0_20, %c0_21] : memref<3x16x24xbf16, #tpu.memory_space<vmem>>, vector<1x16x24xbf16>
    %52 = vector.shape_cast %51 : vector<1x16x24xbf16> to vector<16x24xbf16>
    %cst_22 = arith.constant dense<0.000000e+00> : vector<16x256xf32>
    %53 = tpu.matmul %52, %50, %cst_22 {dimension_numbers = #tpu.dot_dimension_numbers<[1], [0], [0], [1], [0, 0, 1, 1], [], []>} : vector<16x24xbf16>, vector<24x256xbf16>, vector<16x256xf32> -> vector<16x256xf32>
    %54 = vector.extract_strided_slice %42 {offsets = [0, 16], sizes = [8, 256], strides = [1, 1]} : vector<8x290xbf16> to vector<8x256xbf16>
    %55 = vector.broadcast %4 : vector<1x256xbf16> to vector<8x256xbf16>
    %56 = arith.mulf %54, %55 : vector<8x256xbf16>
    %57 = vector.extract_strided_slice %42 {offsets = [0, 17], sizes = [8, 256], strides = [1, 1]} : vector<8x290xbf16> to vector<8x256xbf16>
    %58 = vector.extract_strided_slice %42 {offsets = [0, 18], sizes = [8, 256], strides = [1, 1]} : vector<8x290xbf16> to vector<8x256xbf16>
    %59 = vector.broadcast %5 : vector<1x256xbf16> to vector<8x256xbf16>
    %60 = arith.mulf %58, %59 : vector<8x256xbf16>
    %61 = tpu.concatenate %56, %57, %60 in 0 : vector<8x256xbf16>, vector<8x256xbf16>, vector<8x256xbf16> -> vector<24x256xbf16>
    %c1_23 = arith.constant 1 : index
    %c0_24 = arith.constant 0 : index
    %c0_25 = arith.constant 0 : index
    %62 = vector.load %arg7[%c1_23, %c0_24, %c0_25] : memref<3x16x24xbf16, #tpu.memory_space<vmem>>, vector<1x16x24xbf16>
    %63 = vector.shape_cast %62 : vector<1x16x24xbf16> to vector<16x24xbf16>
    %cst_26 = arith.constant dense<0.000000e+00> : vector<16x256xf32>
    %64 = tpu.matmul %63, %61, %cst_26 {dimension_numbers = #tpu.dot_dimension_numbers<[1], [0], [0], [1], [0, 0, 1, 1], [], []>} : vector<16x24xbf16>, vector<24x256xbf16>, vector<16x256xf32> -> vector<16x256xf32>
    %65 = arith.addf %53, %64 : vector<16x256xf32>
    %66 = vector.extract_strided_slice %42 {offsets = [0, 32], sizes = [8, 256], strides = [1, 1]} : vector<8x290xbf16> to vector<8x256xbf16>
    %67 = vector.broadcast %4 : vector<1x256xbf16> to vector<8x256xbf16>
    %68 = arith.mulf %66, %67 : vector<8x256xbf16>
    %69 = vector.extract_strided_slice %42 {offsets = [0, 33], sizes = [8, 256], strides = [1, 1]} : vector<8x290xbf16> to vector<8x256xbf16>
    %70 = vector.extract_strided_slice %42 {offsets = [0, 34], sizes = [8, 256], strides = [1, 1]} : vector<8x290xbf16> to vector<8x256xbf16>
    %71 = vector.broadcast %5 : vector<1x256xbf16> to vector<8x256xbf16>
    %72 = arith.mulf %70, %71 : vector<8x256xbf16>
    %73 = tpu.concatenate %68, %69, %72 in 0 : vector<8x256xbf16>, vector<8x256xbf16>, vector<8x256xbf16> -> vector<24x256xbf16>
    %c2 = arith.constant 2 : index
    %c0_27 = arith.constant 0 : index
    %c0_28 = arith.constant 0 : index
    %74 = vector.load %arg7[%c2, %c0_27, %c0_28] : memref<3x16x24xbf16, #tpu.memory_space<vmem>>, vector<1x16x24xbf16>
    %75 = vector.shape_cast %74 : vector<1x16x24xbf16> to vector<16x24xbf16>
    %cst_29 = arith.constant dense<0.000000e+00> : vector<16x256xf32>
    %76 = tpu.matmul %75, %73, %cst_29 {dimension_numbers = #tpu.dot_dimension_numbers<[1], [0], [0], [1], [0, 0, 1, 1], [], []>} : vector<16x24xbf16>, vector<24x256xbf16>, vector<16x256xf32> -> vector<16x256xf32>
    %77 = arith.addf %65, %76 : vector<16x256xf32>
    %c0_30 = arith.constant 0 : index
    %c0_31 = arith.constant 0 : index
    %78 = vector.load %arg8[%c0_30, %c0_31] : memref<16x1xf32, #tpu.memory_space<vmem>>, vector<16x1xf32>
    %79 = vector.broadcast %78 : vector<16x1xf32> to vector<16x256xf32>
    %80 = arith.addf %77, %79 : vector<16x256xf32>
    %cst_32 = arith.constant 0.000000e+00 : f32
    %81 = vector.broadcast %cst_32 : f32 to vector<16x256xf32>
    %82 = arith.cmpf ogt, %80, %81 : vector<16x256xf32>
    %cst_33 = arith.constant 1.000000e-01 : f32
    %83 = vector.broadcast %cst_33 : f32 to vector<16x256xf32>
    %84 = arith.mulf %83, %80 : vector<16x256xf32>
    %85 = arith.select %82, %80, %84 : vector<16x256xi1>, vector<16x256xf32>
    %86 = arith.addf %85, %1 : vector<16x256xf32>
    %c0_34 = arith.constant 0 : index
    %c0_35 = arith.constant 0 : index
    %c0_36 = arith.constant 0 : index
    %87 = vector.load %arg9[%c0_34, %c0_35, %c0_36] : memref<1x16x256xf32, #tpu.memory_space<vmem>>, vector<1x16x256xf32>
    %88 = vector.shape_cast %87 : vector<1x16x256xf32> to vector<16x256xf32>
    %89 = vector.shape_cast %86 : vector<16x256xf32> to vector<1x16x256xf32>
    tpu.vector_store %arg9[%c0_34, %c0_35, %c0_36], %89 {strides = array<i32>} : memref<1x16x256xf32, #tpu.memory_space<vmem>>, vector<1x16x256xf32>,
    return
  }
  func.func @transform_0(%arg0: i32, %arg1: i32) -> (i32, i32) {
    %c0_i32 = arith.constant 0 : i32
    %c0_i32_0 = arith.constant 0 : i32
    %c0_i32_1 = arith.constant 0 : i32
    return %c0_i32, %c0_i32_0 : i32, i32
  }
  func.func @transform_1(%arg0: i32, %arg1: i32) -> (i32, i32, i32) {
    %c0_i32 = arith.constant 0 : i32
    %c0_i32_0 = arith.constant 0 : i32
    return %arg0, %c0_i32, %arg1 : i32, i32, i32
  }
  func.func @transform_2(%arg0: i32, %arg1: i32) -> (i32, i32, i32, i32) {
    %c0_i32 = arith.constant 0 : i32
    %c0_i32_0 = arith.constant 0 : i32
    %c0_i32_1 = arith.constant 0 : i32
    return %arg0, %arg1, %c0_i32, %c0_i32_0 : i32, i32, i32, i32
  }
  func.func @transform_3(%arg0: i32, %arg1: i32) -> (i32, i32) {
    %c0_i32 = arith.constant 0 : i32
    %c0_i32_0 = arith.constant 0 : i32
    %c0_i32_1 = arith.constant 0 : i32
    return %c0_i32, %c0_i32_0 : i32, i32
  }
  func.func @transform_4(%arg0: i32, %arg1: i32) -> (i32, i32) {
    %c0_i32 = arith.constant 0 : i32
    %c0_i32_0 = arith.constant 0 : i32
    %c0_i32_1 = arith.constant 0 : i32
    return %c0_i32, %c0_i32_0 : i32, i32
  }
  func.func @transform_5(%arg0: i32, %arg1: i32) -> (i32, i32, i32) {
    %c0_i32 = arith.constant 0 : i32
    %c0_i32_0 = arith.constant 0 : i32
    %c0_i32_1 = arith.constant 0 : i32
    %c0_i32_2 = arith.constant 0 : i32
    return %c0_i32, %c0_i32_0, %c0_i32_1 : i32, i32, i32
  }
  func.func @transform_6(%arg0: i32, %arg1: i32) -> (i32, i32) {
    %c0_i32 = arith.constant 0 : i32
    %c0_i32_0 = arith.constant 0 : i32
    %c0_i32_1 = arith.constant 0 : i32
    return %c0_i32, %c0_i32_0 : i32, i32
  }
  func.func @transform_7(%arg0: i32, %arg1: i32) -> (i32, i32, i32) {
    %c0_i32 = arith.constant 0 : i32
    %c0_i32_0 = arith.constant 0 : i32
    return %arg0, %c0_i32, %arg1 : i32, i32, i32
  }
}

</mosaic_0001>

<llo_original>
// kernel: tpu_custom_call.1
$region0: #{tpu_custom_call.1}
  #allocation0 [shape = 'u32[]', space=smem, size = 0x4, offset = 0x4, fixed_abs, tag = 'smem constant byte address 0x4 - core index']
  #allocation1 [shape = 'u32[144,128]{1,0:T(1,128)}', space=vmem, size = 0x12000, scoped, tag = 'internal scratch']
  %s0 = inlined_call_operand.hbm [shape: bf16[2,256], index: 0, kind: input, shape index: {}]
  %s1 = inlined_call_operand.hbm [shape: f32[2,16,256], index: 1, kind: input, shape index: {}]
  %s2 = inlined_call_operand.vmem [shape: f32[2,1,16,34], index: 2, kind: input, shape index: {}]
  %s3 = inlined_call_operand.vmem [shape: bf16[8,16], index: 3, kind: input, shape index: {}]
  %s4 = inlined_call_operand.vmem [shape: f32[8,1], index: 4, kind: input, shape index: {}]
  %s5 = inlined_call_operand.hbm [shape: bf16[3,16,24], index: 5, kind: input, shape index: {}]
  %s6 = inlined_call_operand.vmem [shape: f32[16,1], index: 6, kind: input, shape index: {}]
  %s7 = inlined_call_operand.hbm [shape: f32[2,16,256], index: 7, kind: output, shape index: {}]
  %s8 = sld [smem:[#allocation0]]
  $region73: #{tpu_custom_call.1} parent=0
    _
  %s10 = ssub.s32 1, %s8
  %s11 = scalar_select 0, %s10, %s8
  $region1: #{tpu_custom_call.1} parent=0
    #allocation2 [shape = 'u8[1024]{0}', space=vmem, size = 0x400, scoped, tag = 'input window, operand 0, single buffered']
    #allocation3 [shape = 's32[2]{0}', space=sflag, size = 0x8, scoped, tag = 'scoped memory for tpu_custom_call.1']
    #allocation4 [shape = 's32[2]{0}', space=sflag, size = 0x8, scoped, tag = 'scoped memory for tpu_custom_call.1']
    #allocation5 [shape = 'u8[32768]{0}', space=vmem, size = 0x8000, scoped, tag = 'input window, operand 1']
    #allocation6 [shape = 's32[2]{0}', space=sflag, size = 0x8, scoped, tag = 'scoped memory for tpu_custom_call.1']
    #allocation7 [shape = 'u8[12288]{0}', space=vmem, size = 0x3000, scoped, tag = 'input window, operand 5, single buffered']
    #allocation8 [shape = 'u8[32768]{0}', space=vmem, size = 0x8000, scoped, tag = 'output window, operand 0']
    %12 = vsyncpa [#allocation3], 0
    %13 = vsyncpa [#allocation6], 0
    %s14 = scalar_lea.sflag [#allocation6], 1
    %15 = vsyncpa %s14, 0
    %16 = vsyncpa [#allocation4], 0
    %s17 = scalar_lea.sflag [#allocation4], 1
    %18 = vsyncpa %s17, 0
    loop: start=0, step=1, limit=4
    $region2: #{tpu_custom_call.1} parent=1 // loop_pre_header
      _
    $region3: #{tpu_custom_call.1} parent=1 // loop_header
      %s20 = sphi 0, %s24
      %p21 = scmp.ge.s32.totalorder %s20, 4
      %s27 = sphi 0, %s39
      %s28 = sphi 0, %s35
      %s29 = sphi 0, %s27
      %s30 = sphi 0, %s28
      %s31 = sphi 0, %s29
      %s32 = sphi 0, %s30
      %s40 = sphi 0, %s40
      %s42 = sphi 0, %s40
      %s43 = sphi 0, %s42
      %s57 = sphi 0, %s43
      %s65 = sphi 0, %s67
      %s68 = sphi 0, %s65
      %s69 = sphi 0, %s68
      %s85 = sphi 0, %s69
      %s93 = sphi 0, %s95
      %s96 = sphi 0, %s93
      %s97 = sphi 0, %s96
      %s113 = sphi 0, %s97
      %s117 = sphi 0, %s117
      %s119 = sphi 0, %s117
      %s120 = sphi 0, %s119
      %s134 = sphi 0, %s120
      %s138 = sphi 0, %s138
      %s140 = sphi 0, %s138
      %s141 = sphi 0, %s140
      %s155 = sphi 0, %s141
      %s159 = sphi 0, %s159
      %s161 = sphi 0, %s159
      %s162 = sphi 0, %s161
      %s176 = sphi 0, %s162
      %s180 = sphi 0, %s180
      %s182 = sphi 0, %s180
      %s183 = sphi 0, %s182
      %s197 = sphi 0, %s183
      %s205 = sphi 0, %s207
      %s208 = sphi 0, %s205
      %s209 = sphi 0, %s208
      %s225 = sphi 0, %s209
    $region4: #{tpu_custom_call.1} parent=1 // loop_header_branch
      %23 = sbr.rel (%p21) target = $region8
    $region5: #{tpu_custom_call.1} parent=1 // loop_body
      %s25 = ssub.s32 %s20, 1
      %s26 = ssub.s32 %s20, 2
      %s33 = sadd.s32 1, %s28
      %p34 = scmp.ge.s32.totalorder %s33, 1
      %s35 = scalar_select %p34, 0, %s33
      %s36 = sadd.s32 1, %s27
      %s37 = scalar_select %p34, %s36, %s27
      %p38 = scmp.ge.s32.totalorder %s37, 2
      %s39 = scalar_select %p38, 0, %s37
      %s41 = sadd.s32 %s40, 1
      %p44 = scmp.eq.s32.totalorder %s20, 1
      %p45 = scmp.ne.s32.totalorder %s40, %s42
      %p46 = scmp.eq.s32.totalorder %s20, 0
      %p47 = por %p45, %p46
      %p48 = scmp.ne.s32.totalorder %s40, %s42
      %p49 = scmp.eq.s32.totalorder %s25, 1
      %p50 = por %p48, %p49
      %p51 = scmp.ne.s32.totalorder %s42, %s43
      %p52 = scmp.eq.s32.totalorder %s25, 0
      %p53 = por %p51, %p52
      %p54 = scmp.ne.s32.totalorder %s42, %s43
      %p55 = scmp.eq.s32.totalorder %s26, 1
      %p56 = por %p54, %p55
      %p58 = scmp.ne.s32.totalorder %s43, %s57
      %p59 = scmp.eq.s32.totalorder %s26, 0
      %p60 = por %p58, %p59
      %s61 = ssub.s32 %s27, %s39
      %s62 = ssub.s32 %s28, %s35
      %s63 = sor.u32 %s61, %s62
      %p64 = scmp.eq.s32.totalorder %s63, 0
      %s66 = sadd.s32 %s65, 1
      %s67 = scalar_select %p64, %s65, %s66
      %p70 = pneg %p64
      %p71 = scmp.eq.s32.totalorder %s20, 1
      %p72 = por %p70, %p71
      %p73 = scmp.ne.s32.totalorder %s65, %s68
      %p74 = scmp.eq.s32.totalorder %s20, 0
      %p75 = por %p73, %p74
      %p76 = scmp.ne.s32.totalorder %s65, %s68
      %p77 = scmp.eq.s32.totalorder %s25, 1
      %p78 = por %p76, %p77
      %p79 = scmp.ne.s32.totalorder %s68, %s69
      %p80 = scmp.eq.s32.totalorder %s25, 0
      %p81 = por %p79, %p80
      %p82 = scmp.ne.s32.totalorder %s68, %s69
      %p83 = scmp.eq.s32.totalorder %s26, 1
      %p84 = por %p82, %p83
      %p86 = scmp.ne.s32.totalorder %s69, %s85
      %p87 = scmp.eq.s32.totalorder %s26, 0
      %p88 = por %p86, %p87
      %s89 = ssub.s32 %s27, %s39
      %s90 = ssub.s32 %s28, %s35
      %s91 = sor.u32 %s89, %s90
      %p92 = scmp.eq.s32.totalorder %s91, 0
      %s94 = sadd.s32 %s93, 1
      %s95 = scalar_select %p92, %s93, %s94
      %p98 = pneg %p92
      %p99 = scmp.eq.s32.totalorder %s20, 1
      %p100 = por %p98, %p99
      %p101 = scmp.ne.s32.totalorder %s93, %s96
      %p102 = scmp.eq.s32.totalorder %s20, 0
      %p103 = por %p101, %p102
      %p104 = scmp.ne.s32.totalorder %s93, %s96
      %p105 = scmp.eq.s32.totalorder %s25, 1
      %p106 = por %p104, %p105
      %p107 = scmp.ne.s32.totalorder %s96, %s97
      %p108 = scmp.eq.s32.totalorder %s25, 0
      %p109 = por %p107, %p108
      %p110 = scmp.ne.s32.totalorder %s96, %s97
      %p111 = scmp.eq.s32.totalorder %s26, 1
      %p112 = por %p110, %p111
      %p114 = scmp.ne.s32.totalorder %s97, %s113
      %p115 = scmp.eq.s32.totalorder %s26, 0
      %p116 = por %p114, %p115
      %s118 = sadd.s32 %s117, 1
      %p121 = scmp.eq.s32.totalorder %s20, 1
      %p122 = scmp.ne.s32.totalorder %s117, %s119
      %p123 = scmp.eq.s32.totalorder %s20, 0
      %p124 = por %p122, %p123
      %p125 = scmp.ne.s32.totalorder %s117, %s119
      %p126 = scmp.eq.s32.totalorder %s25, 1
      %p127 = por %p125, %p126
      %p128 = scmp.ne.s32.totalorder %s119, %s120
      %p129 = scmp.eq.s32.totalorder %s25, 0
      %p130 = por %p128, %p129
      %p131 = scmp.ne.s32.totalorder %s119, %s120
      %p132 = scmp.eq.s32.totalorder %s26, 1
      %p133 = por %p131, %p132
      %p135 = scmp.ne.s32.totalorder %s120, %s134
      %p136 = scmp.eq.s32.totalorder %s26, 0
      %p137 = por %p135, %p136
      %s139 = sadd.s32 %s138, 1
      %p142 = scmp.eq.s32.totalorder %s20, 1
      %p143 = scmp.ne.s32.totalorder %s138, %s140
      %p144 = scmp.eq.s32.totalorder %s20, 0
      %p145 = por %p143, %p144
      %p146 = scmp.ne.s32.totalorder %s138, %s140
      %p147 = scmp.eq.s32.totalorder %s25, 1
      %p148 = por %p146, %p147
      %p149 = scmp.ne.s32.totalorder %s140, %s141
      %p150 = scmp.eq.s32.totalorder %s25, 0
      %p151 = por %p149, %p150
      %p152 = scmp.ne.s32.totalorder %s140, %s141
      %p153 = scmp.eq.s32.totalorder %s26, 1
      %p154 = por %p152, %p153
      %p156 = scmp.ne.s32.totalorder %s141, %s155
      %p157 = scmp.eq.s32.totalorder %s26, 0
      %p158 = por %p156, %p157
      %s160 = sadd.s32 %s159, 1
      %p163 = scmp.eq.s32.totalorder %s20, 1
      %p164 = scmp.ne.s32.totalorder %s159, %s161
      %p165 = scmp.eq.s32.totalorder %s20, 0
      %p166 = por %p164, %p165
      %p167 = scmp.ne.s32.totalorder %s159, %s161
      %p168 = scmp.eq.s32.totalorder %s25, 1
      %p169 = por %p167, %p168
      %p170 = scmp.ne.s32.totalorder %s161, %s162
      %p171 = scmp.eq.s32.totalorder %s25, 0
      %p172 = por %p170, %p171
      %p173 = scmp.ne.s32.totalorder %s161, %s162
      %p174 = scmp.eq.s32.totalorder %s26, 1
      %p175 = por %p173, %p174
      %p177 = scmp.ne.s32.totalorder %s162, %s176
      %p178 = scmp.eq.s32.totalorder %s26, 0
      %p179 = por %p177, %p178
      %s181 = sadd.s32 %s180, 1
      %p184 = scmp.eq.s32.totalorder %s20, 1
      %p185 = scmp.ne.s32.totalorder %s180, %s182
      %p186 = scmp.eq.s32.totalorder %s20, 0
      %p187 = por %p185, %p186
      %p188 = scmp.ne.s32.totalorder %s180, %s182
      %p189 = scmp.eq.s32.totalorder %s25, 1
      %p190 = por %p188, %p189
      %p191 = scmp.ne.s32.totalorder %s182, %s183
      %p192 = scmp.eq.s32.totalorder %s25, 0
      %p193 = por %p191, %p192
      %p194 = scmp.ne.s32.totalorder %s182, %s183
      %p195 = scmp.eq.s32.totalorder %s26, 1
      %p196 = por %p194, %p195
      %p198 = scmp.ne.s32.totalorder %s183, %s197
      %p199 = scmp.eq.s32.totalorder %s26, 0
      %p200 = por %p198, %p199
      %s201 = ssub.s32 %s27, %s39
      %s202 = ssub.s32 %s28, %s35
      %s203 = sor.u32 %s201, %s202
      %p204 = scmp.eq.s32.totalorder %s203, 0
      %s206 = sadd.s32 %s205, 1
      %s207 = scalar_select %p204, %s205, %s206
      %p210 = pneg %p204
      %p211 = scmp.eq.s32.totalorder %s20, 1
      %p212 = por %p210, %p211
      %p213 = scmp.ne.s32.totalorder %s205, %s208
      %p214 = scmp.eq.s32.totalorder %s20, 0
      %p215 = por %p213, %p214
      %p216 = scmp.ne.s32.totalorder %s205, %s208
      %p217 = scmp.eq.s32.totalorder %s25, 1
      %p218 = por %p216, %p217
      %p219 = scmp.ne.s32.totalorder %s208, %s209
      %p220 = scmp.eq.s32.totalorder %s25, 0
      %p221 = por %p219, %p220
      %p222 = scmp.ne.s32.totalorder %s208, %s209
      %p223 = scmp.eq.s32.totalorder %s26, 1
      %p224 = por %p222, %p223
      %p226 = scmp.ne.s32.totalorder %s209, %s225
      %p227 = scmp.eq.s32.totalorder %s26, 0
      %p228 = por %p226, %p227
      %p229 = scmp.le.s32.totalorder 1, %s20
      %p230 = scmp.lt.s32.totalorder %s20, 3
      %p231 = pnand %p229, %p230
      %p232 = pneg %p231
      // Predicated region
      $region9: #{tpu_custom_call.1} parent=5 // pred_check
        _
      $region10: #{tpu_custom_call.1} parent=5 // pred_check_branch
        %234 = sbr.rel (%p231) target = $region12
      $region11: #{tpu_custom_call.1} parent=5 // pred_region
        %s235 = ssub.s32 %s20, 1
        // Predicated region
        $region13: #{tpu_custom_call.1} parent=11 // pred_check
          %p236 = pneg %p53
        $region14: #{tpu_custom_call.1} parent=11 // pred_check_branch
          %238 = sbr.rel (%p236) target = $region16
        $region15: #{tpu_custom_call.1} parent=11 // pred_region
          %s240 = ssub.s32 32, 32
          %241 = vsyncadd [#allocation3], %s240
          %s243 = sshll.u32 [#allocation2], 4
          %s244 = int_to_ptr.vmem [resolvable:$true] %s243
          %246 = dma.hbm_to_vmem [thread:$0]  %s0, 32, %s244, [#allocation3]
        $region16: #{tpu_custom_call.1} parent=11 // pred_fallthru
          _
        // Predicated region
        $region17: #{tpu_custom_call.1} parent=11 // pred_check
          %p247 = pneg %p130
        $region18: #{tpu_custom_call.1} parent=11 // pred_check_branch
          %249 = sbr.rel (%p247) target = $region20
        $region19: #{tpu_custom_call.1} parent=11 // pred_region
          _
        $region20: #{tpu_custom_call.1} parent=11 // pred_fallthru
          _
        // Predicated region
        $region21: #{tpu_custom_call.1} parent=11 // pred_check
          %p250 = pneg %p151
        $region22: #{tpu_custom_call.1} parent=11 // pred_check_branch
          %252 = sbr.rel (%p250) target = $region24
        $region23: #{tpu_custom_call.1} parent=11 // pred_region
          _
        $region24: #{tpu_custom_call.1} parent=11 // pred_fallthru
          _
        // Predicated region
        $region25: #{tpu_custom_call.1} parent=11 // pred_check
          %p253 = pneg %p172
        $region26: #{tpu_custom_call.1} parent=11 // pred_check_branch
          %255 = sbr.rel (%p253) target = $region28
        $region27: #{tpu_custom_call.1} parent=11 // pred_region
          %s257 = ssub.s32 384, 384
          %258 = vsyncadd [#allocation6], %s257
          %s259 = sshll.u32 [#allocation7], 4
          %s260 = int_to_ptr.vmem [resolvable:$true] %s259
          %265 = dma.hbm_to_vmem [thread:$0]  %s5, 384, %s260, [#allocation6], 64, 64, 4
        $region28: #{tpu_custom_call.1} parent=11 // pred_fallthru
          _
        // Predicated region
        $region29: #{tpu_custom_call.1} parent=11 // pred_check
          %p266 = pneg %p193
        $region30: #{tpu_custom_call.1} parent=11 // pred_check_branch
          %268 = sbr.rel (%p266) target = $region32
        $region31: #{tpu_custom_call.1} parent=11 // pred_region
          _
        $region32: #{tpu_custom_call.1} parent=11 // pred_fallthru
          _
      $region12: #{tpu_custom_call.1} parent=5 // pred_fallthru
        _
      %p269 = scmp.lt.s32.totalorder %s20, 2
      // Predicated region
      $region33: #{tpu_custom_call.1} parent=5 // pred_check
        %p270 = pneg %p269
      $region34: #{tpu_custom_call.1} parent=5 // pred_check_branch
        %272 = sbr.rel (%p270) target = $region36
      $region35: #{tpu_custom_call.1} parent=5 // pred_region
        // Predicated region
        $region37: #{tpu_custom_call.1} parent=35 // pred_check
          %p273 = pneg %p75
        $region38: #{tpu_custom_call.1} parent=35 // pred_check_branch
          %275 = sbr.rel (%p273) target = $region40
        $region39: #{tpu_custom_call.1} parent=35 // pred_region
          %s276 = sand.u32 %s20, 1
          %s277 = scalar_lea.sflag [#allocation6], %s276
          %s278 = sand.u32 %s65, 1
          %s279 = smul.addr %s278, 32
          %s280 = scalar_lea.vmem [#allocation5], %s279
          %s281 = smul.u32 2, %s28
          %s283 = ssub.s32 512, 512
          %284 = vsyncadd %s277, %s283
          %s285 = smul.addr %s27, 4
          %s286 = sadd.s32 %s281, %s285
          %s287 = smul.addr %s286, 128
          %s288 = scalar_lea.hbm %s1, %s287
          %s289 = sshll.u32 %s280, 4
          %s290 = int_to_ptr.vmem [resolvable:$true] %s289
          %295 = dma.hbm_to_vmem [thread:$0]  %s288, 512, %s290, %s277, 256, 256, 16
        $region40: #{tpu_custom_call.1} parent=35 // pred_fallthru
          _
        // Predicated region
        $region41: #{tpu_custom_call.1} parent=35 // pred_check
          %p296 = pneg %p103
        $region42: #{tpu_custom_call.1} parent=35 // pred_check_branch
          %298 = sbr.rel (%p296) target = $region44
        $region43: #{tpu_custom_call.1} parent=35 // pred_region
          %p299 = scmp.lt.s32.totalorder %s27, 1
          %s300 = scalar_select %p299, %s27, 1
          %p301 = scmp.lt.s32.totalorder %s28, 0
          %s302 = scalar_select %p301, %s28, 0
          %s303 = smul.addr %s302, 2
          %s304 = smul.addr %s300, 2
          %s305 = sadd.s32 %s303, %s304
          %s306 = smul.addr %s305, 8
          %s307 = scalar_lea.vmem %s2, %s306
        $region44: #{tpu_custom_call.1} parent=35 // pred_fallthru
          _
      $region36: #{tpu_custom_call.1} parent=5 // pred_fallthru
        _
      %p308 = scmp.le.s32.totalorder 1, %s20
      %p309 = scmp.lt.s32.totalorder %s20, 3
      %p310 = pnand %p308, %p309
      %p311 = pneg %p310
      // Predicated region
      $region45: #{tpu_custom_call.1} parent=5 // pred_check
        _
      $region46: #{tpu_custom_call.1} parent=5 // pred_check_branch
        %313 = sbr.rel (%p310) target = $region48
      $region47: #{tpu_custom_call.1} parent=5 // pred_region
        %s314 = ssub.s32 %s20, 1
        // Predicated region
        $region49: #{tpu_custom_call.1} parent=47 // pred_check
          %p315 = pneg %p53
        $region50: #{tpu_custom_call.1} parent=47 // pred_check_branch
          %317 = sbr.rel (%p315) target = $region52
        $region51: #{tpu_custom_call.1} parent=47 // pred_region
          %318 = dma.done [#allocation3], 32
        $region52: #{tpu_custom_call.1} parent=47 // pred_fallthru
          _
        %s319 = sand.u32 %s25, 1
        %s320 = scalar_lea.sflag [#allocation6], %s319
        %s321 = sand.u32 %s68, 1
        %s322 = smul.addr %s321, 32
        %s323 = scalar_lea.vmem [#allocation5], %s322
        // Predicated region
        $region53: #{tpu_custom_call.1} parent=47 // pred_check
          %p324 = pneg %p81
        $region54: #{tpu_custom_call.1} parent=47 // pred_check_branch
          %326 = sbr.rel (%p324) target = $region56
        $region55: #{tpu_custom_call.1} parent=47 // pred_region
          %327 = dma.done %s320, 512
        $region56: #{tpu_custom_call.1} parent=47 // pred_fallthru
          _
        // Predicated region
        $region57: #{tpu_custom_call.1} parent=47 // pred_check
          %p328 = pneg %p172
        $region58: #{tpu_custom_call.1} parent=47 // pred_check_branch
          %330 = sbr.rel (%p328) target = $region60
        $region59: #{tpu_custom_call.1} parent=47 // pred_region
          %331 = dma.done [#allocation6], 384
        $region60: #{tpu_custom_call.1} parent=47 // pred_fallthru
          _
        %p332 = pneg %p53
        %p333 = pneg %p50
        %s334 = sand.u32 %s25, 1
        %s335 = scalar_lea.sflag [#allocation6], %s334
        %s336 = sand.u32 %s68, 1
        %s337 = smul.addr %s336, 32
        %s338 = scalar_lea.vmem [#allocation5], %s337
        %p339 = pneg %p81
        %p340 = pneg %p78
        %p341 = scmp.lt.s32.totalorder %s29, 1
        %s342 = scalar_select %p341, %s29, 1
        %p343 = scmp.lt.s32.totalorder %s30, 0
        %s344 = scalar_select %p343, %s30, 0
        %s345 = smul.addr %s344, 2
        %s346 = smul.addr %s342, 2
        %s347 = sadd.s32 %s345, %s346
        %s348 = smul.addr %s347, 8
        %s349 = scalar_lea.vmem %s2, %s348
        %p350 = pneg %p109
        %p351 = pneg %p106
        %p352 = pneg %p130
        %p353 = pneg %p127
        %p354 = pneg %p151
        %p355 = pneg %p148
        %p356 = pneg %p172
        %p357 = pneg %p169
        %p358 = pneg %p193
        %p359 = pneg %p190
        %p360 = pneg %p221
        %p361 = pneg %p218
        %s362 = sand.u32 %s208, 1
        %s363 = scalar_lea.sflag [#allocation4], %s362
        %s364 = sand.u32 %s208, 1
        %s365 = smul.addr %s364, 32
        %s366 = scalar_lea.vmem [#allocation8], %s365
        %s367 = smul.u32 2, %s30
        %p368 = scmp.lt.s32.totalorder %s29, 1
        %s369 = scalar_select %p368, %s29, 1
        %p370 = scmp.lt.s32.totalorder %s30, 0
        %s371 = scalar_select %p370, %s30, 0
        %s372 = smul.addr %s371, 2
        %s373 = smul.addr %s369, 2
        %s374 = sadd.s32 %s372, %s373
        %s375 = smul.addr %s374, 8
        %s376 = scalar_lea.vmem %s2, %s375
        %s377 = smul.u32 2, %s30
        %v379 = vld [vmem:[%s323] sm:$0xff]
        %v380 = vld [vmem:[%s323 + $0x8] sm:$0xff]
        %v381 = vld [vmem:[%s323 + $0x10] sm:$0xff]
        %v382 = vld [vmem:[%s323 + $0x18] sm:$0xff]
        %v383 = vld [vmem:[%s376] sm:$0xff]
        %v384 = vld [vmem:[%s376 + $0x8] sm:$0xff]
        %v385 = vld [vmem:[#allocation2] sm:$0x3]
        %v386 = vld [vmem:[%s3] sm:$0xf]
        %v387 = vld [vmem:[%s4] sm:$0xff]
        %v388 = vpack.c.bf16 %v381, %v379
        %v389 = vpack.c.bf16 %v382, %v380
        %391 = vset.pattern.permute.xlu0 0
        %392 = vperm.xlu0 %391, %v387
        %v393 = vpop.permute.xlu0 %392
        %vm395 = vcmask 130048
        %v397 = vsel %vm395, %v386, 0
        %399 = vmatprep.subr.bf16.mxu0 %v389
        %400 = vmatpush1.bf16.msra.mxu0 %v388
        %401 = vmatprep.subr.bf16.mxu0 0
        %402 = vmatpush1.bf16.msra.mxu0 0
        %403 = vmatprep.subr.bf16.mxu0 0
        %404 = vmatpush1.bf16.msra.mxu0 0
        %405 = vmatprep.subr.bf16.mxu0 0
        %406 = vmatpush1.bf16.msra.mxu0 0
        %407 = vmatprep.subr.bf16.mxu0 0
        %408 = vmatpush1.bf16.msra.mxu0 0
        %409 = vmatprep.subr.bf16.mxu0 0
        %410 = vmatpush1.bf16.msra.mxu0 0
        %411 = vmatprep.subr.bf16.mxu0 0
        %412 = vmatpush1.bf16.msra.mxu0 0
        %413 = vmatprep.subr.bf16.mxu0 0
        %414 = vmatpush1.bf16.msra.mxu0 0
        %415 = vmatprep.subr.bf16.mxu0 0
        %416 = vmatpush1.bf16.msra.mxu0 0
        %417 = vmatprep.subr.bf16.mxu0 0
        %418 = vmatpush1.bf16.msra.mxu0 0
        %419 = vmatprep.subr.bf16.mxu0 0
        %420 = vmatpush1.bf16.msra.mxu0 0
        %421 = vmatprep.subr.bf16.mxu0 0
        %422 = vmatpush1.bf16.msra.mxu0 0
        %423 = vmatprep.subr.bf16.mxu0 0
        %424 = vmatpush1.bf16.msra.mxu0 0
        %425 = vmatprep.subr.bf16.mxu0 0
        %426 = vmatpush1.bf16.msra.mxu0 0
        %427 = vmatprep.subr.bf16.mxu0 0
        %428 = vmatpush1.bf16.msra.mxu0 0
        %429 = vmatprep.subr.bf16.mxu0 0
        %430 = vmatpush1.bf16.msra.mxu0 0
        %431 = vmatprep.mubr.bf16.mxu0 0
        %432 = vmatmul.mubr.bf16.gmra.mrb[0].mxu0 %v397
        %v433 = vpop.f32.mrb[0].mxu0
        %v434 = vadd.f32 %v393, %v433
        %v435 = vpop.f32.mrb[0].mxu0
        %v436 = vadd.f32 %v393, %v435
        %v437 = vpop.f32.mrb[0].mxu0
        %v438 = vpop.f32.mrb[0].mxu0
        %439 = vdwg.mxu0
        %vm440 = vcmp.gt.f32.partialorder %v434, 0.0
        %vm441 = vcmp.gt.f32.partialorder %v436, 0.0
        %v442 = vmul.f32 %v434, 0.1
        %v443 = vmul.f32 %v436, 0.1
        %v444 = vsel %vm440, %v434, %v442
        %v445 = vsel %vm441, %v436, %v443
        %v446 = vpack.c.bf16 %v444, %v444
        %v447 = vpack.c.bf16 %v445, %v445
        %v448 = vpack.c.bf16 %v384, %v383
        %449 = vmatprep.subr.bf16.mxu0 0
        %450 = vmatpush1.bf16.msra.mxu0 %v448
        %451 = vmatprep.subr.bf16.mxu0 0
        %452 = vmatpush1.bf16.msra.mxu0 0
        %453 = vmatprep.subr.bf16.mxu0 0
        %454 = vmatpush1.bf16.msra.mxu0 0
        %455 = vmatprep.subr.bf16.mxu0 0
        %456 = vmatpush1.bf16.msra.mxu0 0
        %457 = vmatprep.subr.bf16.mxu0 0
        %458 = vmatpush1.bf16.msra.mxu0 0
        %459 = vmatprep.subr.bf16.mxu0 0
        %460 = vmatpush1.bf16.msra.mxu0 0
        %461 = vmatprep.subr.bf16.mxu0 0
        %462 = vmatpush1.bf16.msra.mxu0 0
        %463 = vmatprep.subr.bf16.mxu0 0
        %464 = vmatpush1.bf16.msra.mxu0 0
        %465 = vmatprep.subr.bf16.mxu0 0
        %466 = vmatpush1.bf16.msra.mxu0 0
        %467 = vmatprep.subr.bf16.mxu0 0
        %468 = vmatpush1.bf16.msra.mxu0 0
        %469 = vmatprep.subr.bf16.mxu0 0
        %470 = vmatpush1.bf16.msra.mxu0 0
        %471 = vmatprep.subr.bf16.mxu0 0
        %472 = vmatpush1.bf16.msra.mxu0 0
        %473 = vmatprep.subr.bf16.mxu0 0
        %474 = vmatpush1.bf16.msra.mxu0 0
        %475 = vmatprep.subr.bf16.mxu0 0
        %476 = vmatpush1.bf16.msra.mxu0 0
        %477 = vmatprep.subr.bf16.mxu0 0
        %478 = vmatpush1.bf16.msra.mxu0 0
        %479 = vmatprep.subr.bf16.mxu0 0
        %480 = vmatpush1.bf16.msra.mxu0 0
        %481 = vmatprep.mubr.bf16.mxu0 0
        %482 = vmatmul.mubr.bf16.gmra.mrb[0].mxu0 %v397
        %v483 = vpop.f32.mrb[0].mxu0
        %v484 = vadd.f32 %v393, %v483
        %v485 = vpop.f32.mrb[0].mxu0
        %v486 = vpop.f32.mrb[0].mxu0
        %v487 = vpop.f32.mrb[0].mxu0
        %488 = vdwg.mxu0
        %vm489 = vcmp.gt.f32.partialorder %v484, 0.0
        %v490 = vmul.f32 %v484, 0.1
        %v491 = vsel %vm489, %v484, %v490
        %v492 = vpack.c.bf16 %v491, %v491
        %p493 = scmp.gt.s32.totalorder %s30, 0
        %s494 = scalar_select %p493, 1, 0
        %s495 = scvt.s32.f32 %s494
        %p497 = scmp.ne.f32.partialorder %s495, %s495
        %s498 = sshrl.u32 %s495, 16
        %s499 = sand.u32 %s498, 1
        %s500 = sadd.s32 32767, %s499
        %s501 = sadd.s32 %s495, %s500
        %s502 = sand.u32 %s501, 4294901760
        %s503 = scalar_select %p497, 2143289344, %s502
        %s505 = sshrl.u32 %s503, 16
        %p506 = scmp.lt.s32.totalorder %s30, 0
        %s507 = scalar_select %p506, 1, 0
        %s508 = scvt.s32.f32 %s507
        %p510 = scmp.ne.f32.partialorder %s508, %s508
        %s511 = sshrl.u32 %s508, 16
        %s512 = sand.u32 %s511, 1
        %s513 = sadd.s32 32767, %s512
        %s514 = sadd.s32 %s508, %s513
        %s515 = sand.u32 %s514, 4294901760
        %s516 = scalar_select %p510, 2143289344, %s515
        %s518 = sshrl.u32 %s516, 16
        %s519 = sshll.u32 %s505, 16
        %s520 = sor.u32 %s505, %s519
        %v521 = vstv %s520
        %v523 = vmul.bf16 %v492, %v521
        %s524 = sshll.u32 %s518, 16
        %s525 = sor.u32 %s518, %s524
        %v526 = vstv %s525
        %v528 = vmul.bf16 %v492, %v526
        %531 = vrot.lane.b32.xlu0 %v446, 17
        %v532 = vpop.permute.xlu0 %531
        %533 = vrot.lane.b32.xlu0 %v447, 17
        %v534 = vpop.permute.xlu0 %533
        %vm535 = vcmask 138240
        %v536 = vsel %vm535, %v532, %v534
        %vm538 = vcmask 138240
        %v541 = vsel %vm538, %v523, %v532
        %v545 = vsel %vm538, %v534, %v528
        %v549 = vunpack.c.l.s4 1966171168
        %v550 = vunpack.c.0.s8 %v549
        %v551 = vlaneseq
        %v552 = vshrl.u32 %v551, 7
        %v553 = vsub.s32 %v550, %v552
        %v554 = vrot.slane %v385, %v553
        %v555 = vcombine.high %v554, %v554
        %v557 = vunpack.c.l.s4 1966171168
        %v558 = vunpack.c.0.s8 %v557
        %v559 = vlaneseq
        %v560 = vshrl.u32 %v559, 7
        %v561 = vsub.s32 %v558, %v560
        %v562 = vrot.slane %v554, %v561
        %v564 = vunpack.c.l.s4 1966171168
        %v565 = vunpack.c.0.s8 %v564
        %v566 = vlaneseq
        %v567 = vshrl.u32 %v566, 7
        %v568 = vsub.s32 %v565, %v567
        %v569 = vrot.slane %v555, %v568
        %v571 = vpack.i.b16 %v562, %v562
        %v573 = vlaneseq
        %v574 = vshrl.u32 %v573, 7
        %v575 = vsub.s32 0, %v574
        %v576 = vrot.slane %v571, %v575
        %v578 = vpack.i.b16 %v569, %v569
        %v580 = vlaneseq
        %v581 = vshrl.u32 %v580, 7
        %v582 = vsub.s32 0, %v581
        %v583 = vrot.slane %v578, %v582
        %v584 = vmul.bf16 %v541, %v576
        %v585 = vmul.bf16 %v536, %v583
        %v586 = vshrl.u32 %v562, 16
        %v587 = vpack.i.b16 %v586, %v586
        %v589 = vlaneseq
        %v590 = vshrl.u32 %v589, 7
        %v591 = vsub.s32 0, %v590
        %v592 = vrot.slane %v587, %v591
        %v593 = vshrl.u32 %v569, 16
        %v594 = vpack.i.b16 %v593, %v593
        %v596 = vlaneseq
        %v597 = vshrl.u32 %v596, 7
        %v598 = vsub.s32 0, %v597
        %v599 = vrot.slane %v594, %v598
        %602 = vrot.lane.b32.xlu0 %v592, 2
        %v603 = vpop.permute.xlu0 %602
        %604 = vrot.lane.b32.xlu0 %v599, 2
        %v605 = vpop.permute.xlu0 %604
        %vm606 = vcmask 15360
        %v607 = vsel %vm606, %v603, %v605
        %v611 = vmul.bf16 %v541, %v603
        %v612 = vmul.bf16 %v536, %v607
        %v613 = vmul.bf16 %v545, %v605
        %v616 = vrot.slane %v541, 4
        %v617 = vrot.slane %v536, 4
        %v618 = vrot.slane %v545, 4
        %619 = vrot.lane.b32.xlu0 %v616, 127
        %v620 = vpop.permute.xlu0 %619
        %621 = vrot.lane.b32.xlu0 %v617, 127
        %v622 = vpop.permute.xlu0 %621
        %623 = vrot.lane.b32.xlu0 %v618, 127
        %v624 = vpop.permute.xlu0 %623
        %vm625 = vcmask 1039360
        %v626 = vsel %vm625, %v620, %v622
        %v627 = vsel %vm625, %v622, %v624
        %631 = vrot.lane.b32.xlu0 %v611, 126
        %v632 = vpop.permute.xlu0 %631
        %633 = vrot.lane.b32.xlu0 %v612, 126
        %v634 = vpop.permute.xlu0 %633
        %635 = vrot.lane.b32.xlu0 %v613, 126
        %v636 = vpop.permute.xlu0 %635
        %vm637 = vcmask 1031168
        %v638 = vsel %vm637, %v632, %v634
        %v639 = vsel %vm637, %v634, %v636
        %vm640 = vcmask 1043456
        %v643 = vsel %vm640, %v584, %v626
        %v647 = vsel %vm640, %v585, %v627
        %v649 = vld [vmem:[#allocation7] sm:$0xf]
        %v650 = vld [vmem:[#allocation7 + $0x4] sm:$0xf]
        %653 = vrot.lane.b32.xlu0 %v576, 16
        %v654 = vpop.permute.xlu0 %653
        %655 = vrot.lane.b32.xlu0 %v583, 16
        %v656 = vpop.permute.xlu0 %655
        %vm657 = vcmask 130048
        %v658 = vsel %vm657, %v654, %v656
        %v662 = vmul.bf16 %v541, %v654
        %v663 = vmul.bf16 %v536, %v658
        %v664 = vmul.bf16 %v545, %v656
        %665 = vrot.lane.b32.xlu0 %v592, 18
        %v666 = vpop.permute.xlu0 %665
        %667 = vrot.lane.b32.xlu0 %v599, 18
        %v668 = vpop.permute.xlu0 %667
        %vm669 = vcmask 146432
        %v670 = vsel %vm669, %v666, %v668
        %v674 = vmul.bf16 %v541, %v666
        %v675 = vmul.bf16 %v536, %v670
        %v676 = vmul.bf16 %v545, %v668
        %680 = vrot.lane.b32.xlu0 %v674, 126
        %v681 = vpop.permute.xlu0 %680
        %682 = vrot.lane.b32.xlu0 %v675, 126
        %v683 = vpop.permute.xlu0 %682
        %684 = vrot.lane.b32.xlu0 %v676, 126
        %v685 = vpop.permute.xlu0 %684
        %v686 = vsel %vm637, %v681, %v683
        %v687 = vsel %vm637, %v683, %v685
        %v689 = vsel %vm640, %v662, %v626
        %v691 = vsel %vm640, %v663, %v627
        %v694 = vsel %vm640, %v664, %v624
        %s695 = scalar_lea.vmem [#allocation7], 8
        %v696 = vld [vmem:[%s695] sm:$0xf]
        %v697 = vld [vmem:[%s695 + $0x4] sm:$0xf]
        %v700 = vunpack.c.l.b16 %v696
        %v701 = vunpack.c.l.b16 %v697
        %v702 = vpack.c.b16 %v701, %v700
        %706 = vrot.lane.b32.xlu0 %v689, 112
        %v707 = vpop.permute.xlu0 %706
        %708 = vrot.lane.b32.xlu0 %v691, 112
        %v709 = vpop.permute.xlu0 %708
        %710 = vrot.lane.b32.xlu0 %v694, 112
        %v711 = vpop.permute.xlu0 %710
        %712 = vrot.lane.b32.xlu0 %v686, 112
        %v713 = vpop.permute.xlu0 %712
        %714 = vrot.lane.b32.xlu0 %v687, 112
        %v715 = vpop.permute.xlu0 %714
        %716 = vrot.lane.b32.xlu0 %v685, 112
        %v717 = vpop.permute.xlu0 %716
        %vm718 = vcmask 916480
        %v719 = vsel %vm718, %v707, %v709
        %v720 = vsel %vm718, %v709, %v711
        %v721 = vsel %vm718, %v713, %v715
        %v722 = vsel %vm718, %v715, %v717
        %vm725 = vcmask 195584
        %v727 = vsel %vm725, %v702, 0
        %v730 = vsel %vm640, %v721, 0
        %v733 = vsel %vm640, %v722, 0
        %735 = vmatprep.subr.bf16.mxu0 %v720
        %736 = vmatpush1.bf16.msra.mxu0 %v719
        %737 = vmatprep.subr.bf16.mxu0 %v733
        %738 = vmatpush1.bf16.msra.mxu0 %v730
        %739 = vmatprep.subr.bf16.mxu0 0
        %740 = vmatpush1.bf16.msra.mxu0 0
        %741 = vmatprep.subr.bf16.mxu0 0
        %742 = vmatpush1.bf16.msra.mxu0 0
        %743 = vmatprep.subr.bf16.mxu0 0
        %744 = vmatpush1.bf16.msra.mxu0 0
        %745 = vmatprep.subr.bf16.mxu0 0
        %746 = vmatpush1.bf16.msra.mxu0 0
        %747 = vmatprep.subr.bf16.mxu0 0
        %748 = vmatpush1.bf16.msra.mxu0 0
        %749 = vmatprep.subr.bf16.mxu0 0
        %750 = vmatpush1.bf16.msra.mxu0 0
        %751 = vmatprep.subr.bf16.mxu0 0
        %752 = vmatpush1.bf16.msra.mxu0 0
        %753 = vmatprep.subr.bf16.mxu0 0
        %754 = vmatpush1.bf16.msra.mxu0 0
        %755 = vmatprep.subr.bf16.mxu0 0
        %756 = vmatpush1.bf16.msra.mxu0 0
        %757 = vmatprep.subr.bf16.mxu0 0
        %758 = vmatpush1.bf16.msra.mxu0 0
        %759 = vmatprep.subr.bf16.mxu0 0
        %760 = vmatpush1.bf16.msra.mxu0 0
        %761 = vmatprep.subr.bf16.mxu0 0
        %762 = vmatpush1.bf16.msra.mxu0 0
        %763 = vmatprep.subr.bf16.mxu0 0
        %764 = vmatpush1.bf16.msra.mxu0 0
        %765 = vmatprep.subr.bf16.mxu0 0
        %766 = vmatpush1.bf16.msra.mxu0 0
        %767 = vmatprep.mubr.bf16.mxu0 0
        %768 = vmatmul.mubr.bf16.gmra.mrb[0].mxu0 %v727
        %v769 = vpop.f32.mrb[0].mxu0
        %v770 = vadd.f32 0.0, %v769
        %v771 = vpop.f32.mrb[0].mxu0
        %v772 = vadd.f32 0.0, %v771
        %v773 = vpop.f32.mrb[0].mxu0
        %v774 = vadd.f32 0.0, %v773
        %v775 = vpop.f32.mrb[0].mxu0
        %v776 = vadd.f32 0.0, %v775
        %777 = vdwg.mxu0
        %v780 = vunpack.c.l.b16 %v649
        %v781 = vunpack.c.l.b16 %v650
        %v782 = vpack.c.b16 %v781, %v780
        %v784 = vsel %vm725, %v782, 0
        %v787 = vsel %vm640, %v638, 0
        %v790 = vsel %vm640, %v639, 0
        %792 = vmatprep.subr.bf16.mxu0 %v647
        %793 = vmatpush1.bf16.msra.mxu0 %v643
        %794 = vmatprep.subr.bf16.mxu0 %v790
        %795 = vmatpush1.bf16.msra.mxu0 %v787
        %796 = vmatprep.subr.bf16.mxu0 0
        %797 = vmatpush1.bf16.msra.mxu0 0
        %798 = vmatprep.subr.bf16.mxu0 0
        %799 = vmatpush1.bf16.msra.mxu0 0
        %800 = vmatprep.subr.bf16.mxu0 0
        %801 = vmatpush1.bf16.msra.mxu0 0
        %802 = vmatprep.subr.bf16.mxu0 0
        %803 = vmatpush1.bf16.msra.mxu0 0
        %804 = vmatprep.subr.bf16.mxu0 0
        %805 = vmatpush1.bf16.msra.mxu0 0
        %806 = vmatprep.subr.bf16.mxu0 0
        %807 = vmatpush1.bf16.msra.mxu0 0
        %808 = vmatprep.subr.bf16.mxu0 0
        %809 = vmatpush1.bf16.msra.mxu0 0
        %810 = vmatprep.subr.bf16.mxu0 0
        %811 = vmatpush1.bf16.msra.mxu0 0
        %812 = vmatprep.subr.bf16.mxu0 0
        %813 = vmatpush1.bf16.msra.mxu0 0
        %814 = vmatprep.subr.bf16.mxu0 0
        %815 = vmatpush1.bf16.msra.mxu0 0
        %816 = vmatprep.subr.bf16.mxu0 0
        %817 = vmatpush1.bf16.msra.mxu0 0
        %818 = vmatprep.subr.bf16.mxu0 0
        %819 = vmatpush1.bf16.msra.mxu0 0
        %820 = vmatprep.subr.bf16.mxu0 0
        %821 = vmatpush1.bf16.msra.mxu0 0
        %822 = vmatprep.subr.bf16.mxu0 0
        %823 = vmatpush1.bf16.msra.mxu0 0
        %824 = vmatprep.mubr.bf16.mxu0 0
        %825 = vmatmul.mubr.bf16.gmra.mrb[0].mxu0 %v784
        %v826 = vpop.f32.mrb[0].mxu0
        %v827 = vadd.f32 %v770, %v826
        %v828 = vpop.f32.mrb[0].mxu0
        %v829 = vadd.f32 %v772, %v828
        %v830 = vpop.f32.mrb[0].mxu0
        %v831 = vadd.f32 %v774, %v830
        %v832 = vpop.f32.mrb[0].mxu0
        %v833 = vadd.f32 %v776, %v832
        %834 = vdwg.mxu0
        %835 = vrot.lane.b32.xlu0 %v576, 32
        %v836 = vpop.permute.xlu0 %835
        %837 = vrot.lane.b32.xlu0 %v583, 32
        %v838 = vpop.permute.xlu0 %837
        %vm839 = vcmask 261120
        %v840 = vsel %vm839, %v836, %v838
        %v844 = vmul.bf16 %v541, %v836
        %v845 = vmul.bf16 %v536, %v840
        %v846 = vmul.bf16 %v545, %v838
        %847 = vrot.lane.b32.xlu0 %v592, 34
        %v848 = vpop.permute.xlu0 %847
        %849 = vrot.lane.b32.xlu0 %v599, 34
        %v850 = vpop.permute.xlu0 %849
        %vm851 = vcmask 277504
        %v852 = vsel %vm851, %v848, %v850
        %v856 = vmul.bf16 %v541, %v848
        %v857 = vmul.bf16 %v536, %v852
        %v858 = vmul.bf16 %v545, %v850
        %862 = vrot.lane.b32.xlu0 %v856, 126
        %v863 = vpop.permute.xlu0 %862
        %864 = vrot.lane.b32.xlu0 %v857, 126
        %v865 = vpop.permute.xlu0 %864
        %866 = vrot.lane.b32.xlu0 %v858, 126
        %v867 = vpop.permute.xlu0 %866
        %v868 = vsel %vm637, %v863, %v865
        %v869 = vsel %vm637, %v865, %v867
        %v871 = vsel %vm640, %v844, %v626
        %v873 = vsel %vm640, %v845, %v627
        %v875 = vsel %vm640, %v846, %v624
        %s876 = scalar_lea.vmem [#allocation7], 16
        %v877 = vld [vmem:[%s876] sm:$0xf]
        %v878 = vld [vmem:[%s876 + $0x4] sm:$0xf]
        %v881 = vunpack.c.l.b16 %v877
        %v882 = vunpack.c.l.b16 %v878
        %v883 = vpack.c.b16 %v882, %v881
        %887 = vrot.lane.b32.xlu0 %v871, 96
        %v888 = vpop.permute.xlu0 %887
        %889 = vrot.lane.b32.xlu0 %v873, 96
        %v890 = vpop.permute.xlu0 %889
        %891 = vrot.lane.b32.xlu0 %v875, 96
        %v892 = vpop.permute.xlu0 %891
        %893 = vrot.lane.b32.xlu0 %v868, 96
        %v894 = vpop.permute.xlu0 %893
        %895 = vrot.lane.b32.xlu0 %v869, 96
        %v896 = vpop.permute.xlu0 %895
        %897 = vrot.lane.b32.xlu0 %v867, 96
        %v898 = vpop.permute.xlu0 %897
        %vm899 = vcmask 785408
        %v900 = vsel %vm899, %v888, %v890
        %v901 = vsel %vm899, %v890, %v892
        %v902 = vsel %vm899, %v894, %v896
        %v903 = vsel %vm899, %v896, %v898
        %v907 = vsel %vm725, %v883, 0
        %v910 = vsel %vm640, %v902, 0
        %v913 = vsel %vm640, %v903, 0
        %915 = vmatprep.subr.bf16.mxu0 %v901
        %916 = vmatpush1.bf16.msra.mxu0 %v900
        %917 = vmatprep.subr.bf16.mxu0 %v913
        %918 = vmatpush1.bf16.msra.mxu0 %v910
        %919 = vmatprep.subr.bf16.mxu0 0
        %920 = vmatpush1.bf16.msra.mxu0 0
        %921 = vmatprep.subr.bf16.mxu0 0
        %922 = vmatpush1.bf16.msra.mxu0 0
        %923 = vmatprep.subr.bf16.mxu0 0
        %924 = vmatpush1.bf16.msra.mxu0 0
        %925 = vmatprep.subr.bf16.mxu0 0
        %926 = vmatpush1.bf16.msra.mxu0 0
        %927 = vmatprep.subr.bf16.mxu0 0
        %928 = vmatpush1.bf16.msra.mxu0 0
        %929 = vmatprep.subr.bf16.mxu0 0
        %930 = vmatpush1.bf16.msra.mxu0 0
        %931 = vmatprep.subr.bf16.mxu0 0
        %932 = vmatpush1.bf16.msra.mxu0 0
        %933 = vmatprep.subr.bf16.mxu0 0
        %934 = vmatpush1.bf16.msra.mxu0 0
        %935 = vmatprep.subr.bf16.mxu0 0
        %936 = vmatpush1.bf16.msra.mxu0 0
        %937 = vmatprep.subr.bf16.mxu0 0
        %938 = vmatpush1.bf16.msra.mxu0 0
        %939 = vmatprep.subr.bf16.mxu0 0
        %940 = vmatpush1.bf16.msra.mxu0 0
        %941 = vmatprep.subr.bf16.mxu0 0
        %942 = vmatpush1.bf16.msra.mxu0 0
        %943 = vmatprep.subr.bf16.mxu0 0
        %944 = vmatpush1.bf16.msra.mxu0 0
        %945 = vmatprep.subr.bf16.mxu0 0
        %946 = vmatpush1.bf16.msra.mxu0 0
        %947 = vmatprep.mubr.bf16.mxu0 0
        %948 = vmatmul.mubr.bf16.gmra.mrb[0].mxu0 %v907
        %v949 = vpop.f32.mrb[0].mxu0
        %v950 = vadd.f32 0.0, %v949
        %v951 = vpop.f32.mrb[0].mxu0
        %v952 = vadd.f32 0.0, %v951
        %v953 = vpop.f32.mrb[0].mxu0
        %v954 = vadd.f32 0.0, %v953
        %v955 = vpop.f32.mrb[0].mxu0
        %v956 = vadd.f32 0.0, %v955
        %957 = vdwg.mxu0
        %v958 = vadd.f32 %v827, %v950
        %v959 = vadd.f32 %v829, %v952
        %v960 = vadd.f32 %v831, %v954
        %v961 = vadd.f32 %v833, %v956
        %v962 = vld [vmem:[%s6] sm:$0xff]
        %v963 = vld [vmem:[%s6 + $0x8] sm:$0xff]
        %965 = vset.pattern.permute.xlu0 0
        %966 = vperm.xlu0 %965, %v962
        %v967 = vpop.permute.xlu0 %966
        %970 = vset.pattern.permute.xlu0 0
        %971 = vperm.xlu0 %970, %v963
        %v972 = vpop.permute.xlu0 %971
        %v974 = vadd.f32 %v958, %v967
        %v975 = vadd.f32 %v959, %v967
        %v976 = vadd.f32 %v960, %v972
        %v977 = vadd.f32 %v961, %v972
        %vm978 = vcmp.gt.f32.partialorder %v974, 0.0
        %vm979 = vcmp.gt.f32.partialorder %v975, 0.0
        %vm980 = vcmp.gt.f32.partialorder %v976, 0.0
        %vm981 = vcmp.gt.f32.partialorder %v977, 0.0
        %v982 = vmul.f32 %v974, 0.1
        %v983 = vmul.f32 %v975, 0.1
        %v984 = vmul.f32 %v976, 0.1
        %v985 = vmul.f32 %v977, 0.1
        %v986 = vsel %vm978, %v974, %v982
        %v987 = vsel %vm979, %v975, %v983
        %v988 = vsel %vm980, %v976, %v984
        %v989 = vsel %vm981, %v977, %v985
        %v990 = vadd.f32 %v986, %v379
        %v991 = vadd.f32 %v987, %v380
        %v992 = vadd.f32 %v988, %v381
        %v993 = vadd.f32 %v989, %v382
        %994 = vst [vmem:[%s366] sm:$0xff] %v990
        %995 = vst [vmem:[%s366 + $0x8] sm:$0xff] %v991
        %996 = vst [vmem:[%s366 + $0x10] sm:$0xff] %v992
        %997 = vst [vmem:[%s366 + $0x18] sm:$0xff] %v993
        %s998 = sand.u32 %s208, 1
        %s999 = scalar_lea.sflag [#allocation4], %s998
        %s1000 = sand.u32 %s208, 1
        %s1001 = smul.addr %s1000, 32
        %s1002 = scalar_lea.vmem [#allocation8], %s1001
        // Predicated region
        $region61: #{tpu_custom_call.1} parent=47 // pred_check
          %p1003 = pneg %p218
        $region62: #{tpu_custom_call.1} parent=47 // pred_check_branch
          %1005 = sbr.rel (%p1003) target = $region64
        $region63: #{tpu_custom_call.1} parent=47 // pred_region
          %s1006 = smul.u32 2, %s30
          %s1008 = ssub.s32 512, 512
          %1009 = vsyncadd %s999, %s1008
          %s1010 = smul.addr %s29, 4
          %s1011 = sadd.s32 %s1006, %s1010
          %s1012 = smul.addr %s1011, 128
          %s1013 = scalar_lea.hbm %s7, %s1012
          %s1014 = sshll.u32 %s1002, 4
          %s1015 = int_to_ptr.vmem [resolvable:$true] %s1014
          %1020 = dma.vmem_to_hbm [thread:$0]  %s1015, 512, %s1013, %s999, 256, 256, 16
        $region64: #{tpu_custom_call.1} parent=47 // pred_fallthru
          _
      $region48: #{tpu_custom_call.1} parent=5 // pred_fallthru
        _
      %p1021 = scmp.le.s32.totalorder 2, %s20
      // Predicated region
      $region65: #{tpu_custom_call.1} parent=5 // pred_check
        %p1022 = pneg %p1021
      $region66: #{tpu_custom_call.1} parent=5 // pred_check_branch
        %1024 = sbr.rel (%p1022) target = $region68
      $region67: #{tpu_custom_call.1} parent=5 // pred_region
        %s1025 = ssub.s32 %s20, 2
        // Predicated region
        $region69: #{tpu_custom_call.1} parent=67 // pred_check
          %p1026 = pneg %p224
        $region70: #{tpu_custom_call.1} parent=67 // pred_check_branch
          %1028 = sbr.rel (%p1026) target = $region72
        $region71: #{tpu_custom_call.1} parent=67 // pred_region
          %s1029 = sand.u32 %s209, 1
          %s1030 = scalar_lea.sflag [#allocation4], %s1029
          %s1031 = sand.u32 %s209, 1
          %s1032 = smul.addr %s1031, 32
          %s1033 = scalar_lea.vmem [#allocation8], %s1032
          %1034 = dma.done %s1030, 512
        $region72: #{tpu_custom_call.1} parent=67 // pred_fallthru
          _
      $region68: #{tpu_custom_call.1} parent=5 // pred_fallthru
        _
    $region6: #{tpu_custom_call.1} parent=1 // loop_footer
      %s24 = sadd.s32 1, %s20
    $region7: #{tpu_custom_call.1} parent=1 // loop_footer_branch
      %19 = sbr.rel target = $region3
    $region8: #{tpu_custom_call.1} parent=1 // loop_exit
      _
    %1035 = vsyncpa [#allocation3], 1
    %s1036 = scalar_lea.sflag [#allocation3], 1
    %1037 = vsyncpa %s1036, 1
    %1038 = vsyncpa [#allocation6], 1
    %s1039 = scalar_lea.sflag [#allocation6], 1
    %1040 = vsyncpa %s1039, 1
    %1041 = vsyncpa [#allocation4], 1
    %s1042 = scalar_lea.sflag [#allocation4], 1
    %1043 = vsyncpa %s1042, 1

</llo_original>
